<compile_context>
chip_gen: v5e
topology: v5e:2x2
jax: 0.10.0
libtpu: 0.0.40
codegen_flags: <defaults>
</compile_context>

<pallas_src>
import jax
import jax.numpy as jnp
from jax.experimental import pallas as pl
from jax.experimental.pallas import tpu as pltpu

LANE = 128      # lane width  (last dim alignment)
SUBLANE = 8     # sublane     (second-to-last dim alignment)


def _round_up(x, m):
    return -(-x // m) * m


def _pad2(a, rows, cols):
    return jnp.pad(a, ((0, rows - a.shape[0]), (0, cols - a.shape[1])))


def encoder_kernel(x_ref, w1_ref, b1_ref, w2_ref, b2_ref, w3_ref, b3_ref, z_ref):
    # Fused 3-layer MLP on one (TB, D_in) batch tile.
    # f32 input is cast to bf16 in-kernel; matmuls run on the MXU with f32
    # accumulation; bias + ReLU epilogue in f32.
    x = x_ref[...].astype(jnp.bfloat16)                              # (TB, Din)

    h1 = jnp.dot(x, w1_ref[...], preferred_element_type=jnp.float32) + b1_ref[...]
    h1 = jnp.maximum(h1, 0.0).astype(jnp.bfloat16)

    h2 = jnp.dot(h1, w2_ref[...], preferred_element_type=jnp.float32) + b2_ref[...]
    h2 = jnp.maximum(h2, 0.0).astype(jnp.bfloat16)

    h3 = jnp.dot(h2, w3_ref[...], preferred_element_type=jnp.float32) + b3_ref[...]
    z_ref[...] = jnp.maximum(h3, 0.0).astype(z_ref.dtype)


def _choose_batch_tile(batch, block_batch):
    """Pick a SUBLANE-aligned batch tile.

    Small batches (<=1024 rows) -> a single exact tile (zero pad/slice work).
    Larger batches -> >=2 near-equal tiles: amortizes per-step pipeline
    overhead, bounds remainder waste, and keeps the grid long enough for
    megacore sharding on v7x.
    """
    batch_aligned = _round_up(max(batch, 1), SUBLANE)
    if batch_aligned <= min(block_batch, 1024):
        return batch_aligned
    n_tiles = max(2, pl.cdiv(batch_aligned, block_batch))
    return _round_up(pl.cdiv(batch_aligned, n_tiles), SUBLANE)


def encoder_forward(w, params, *, block_batch=2048):
    """w: (batch, input_size) f32. params: transposed (in, out) f32 weights + (1, out) biases."""
    batch, d_in = w.shape
    h1_dim = params["w1"].shape[1]
    h2_dim = params["w2"].shape[1]
    lat = params["w3"].shape[1]

    # Hidden dims padded to 128 lanes (lane-dense intermediates; zero-padded
    # weight rows/bias lanes stay exactly 0 through ReLU so results are exact).
    # Input and latent dims are NOT padded: their blocks equal the full array
    # dim, which satisfies the (8,128) rule, and it avoids extra HBM traffic.
    h1_p = max(_round_up(h1_dim, LANE), LANE)
    h2_p = max(_round_up(h2_dim, LANE), LANE)

    tb = _choose_batch_tile(batch, block_batch)
    grid = (pl.cdiv(batch, tb),)

    # Weights/biases are tiny: pad + cast once in the wrapper (bf16 weights,
    # f32 biases). The big activation tensors never take a wrapper pass.
    w1 = _pad2(params["w1"], d_in, h1_p).astype(jnp.bfloat16)
    b1 = _pad2(params["b1"], 1, h1_p)
    w2 = _pad2(params["w2"], h1_p, h2_p).astype(jnp.bfloat16)
    b2 = _pad2(params["b2"], 1, h2_p)
    w3 = _pad2(params["w3"], h2_p, lat).astype(jnp.bfloat16)
    b3 = params["b3"].astype(jnp.float32)

    flops = 2 * batch * (d_in * h1_p + h1_p * h2_p + h2_p * lat)
    weight_bytes = sum(int(t.size) * t.dtype.itemsize for t in (w1, b1, w2, b2, w3, b3))
    bytes_accessed = batch * d_in * 4 + weight_bytes + batch * lat * 4

    # Rough VMEM budget: double-buffered x/z tiles + in-kernel intermediates
    # + resident (double-buffered) weights, with 2x headroom, capped for v7x.
    vmem_est = (
        2 * tb * d_in * 4                       # x tiles (f32)
        + 2 * tb * lat * 4                      # z tiles (f32)
        + tb * (2 * d_in + 6 * h1_p + 6 * h2_p + 4 * lat)  # live values
        + 2 * weight_bytes
    )
    vmem_limit = int(min(max(2 * vmem_est, 16 << 20), 64 << 20))

    def resident(shape):
        # Full-array block, constant block index -> stays in VMEM across grid steps.
        return pl.BlockSpec(shape, lambda i: (0, 0))

    z = pl.pallas_call(
        encoder_kernel,
        out_shape=jax.ShapeDtypeStruct((batch, lat), jnp.float32),
        grid=grid,
        in_specs=[
            pl.BlockSpec((tb, d_in), lambda i: (i, 0)),     # batch-tiled f32 input
            resident(w1.shape), resident(b1.shape),
            resident(w2.shape), resident(b2.shape),
            resident(w3.shape), resident(b3.shape),
        ],
        out_specs=pl.BlockSpec((tb, lat), lambda i: (i, 0)),  # unpadded latent out
        compiler_params=pltpu.CompilerParams(
            dimension_semantics=("parallel",),
            vmem_limit_bytes=vmem_limit,
        ),
        cost_estimate=pl.CostEstimate(
            flops=int(flops), transcendentals=0, bytes_accessed=int(bytes_accessed)
        ),
    )(w, w1, b1, w2, b2, w3, b3)

    return z


def init_params(key, input_size, latent_size):
    """Deterministic synthetic init mirroring nn.Linear shapes (stored transposed, f32)."""
    h1 = input_size // 2
    h2 = input_size // 4
    ks = jax.random.split(key, 6)

    def lin(kw, kb, fan_in, fan_out):
        bound = 1.0 / jnp.sqrt(fan_in)
        # PyTorch Linear weight is (out, in); we store (in, out) for x @ W.
        wgt = jax.random.uniform(kw, (fan_in, fan_out), jnp.float32, -bound, bound)
        b = jax.random.uniform(kb, (1, fan_out), jnp.float32, -bound, bound)
        return wgt, b

    w1, b1 = lin(ks[0], ks[1], input_size, h1)
    w2, b2 = lin(ks[2], ks[3], h1, h2)
    w3, b3 = lin(ks[4], ks[5], h2, latent_size)
    return dict(w1=w1, b1=b1, w2=w2, b2=b2, w3=w3, b3=b3)


def reference_forward(w, params):
    # Same numerics as the kernel: bf16 matmul operands, f32 accumulation/epilogue.
    bf = lambda a: a.astype(jnp.bfloat16)
    h1 = jnp.maximum(
        jnp.dot(bf(w), bf(params["w1"]), preferred_element_type=jnp.float32) + params["b1"], 0.0)
    h2 = jnp.maximum(
        jnp.dot(bf(h1), bf(params["w2"]), preferred_element_type=jnp.float32) + params["b2"], 0.0)
    h3 = jnp.maximum(
        jnp.dot(bf(h2), bf(params["w3"]), preferred_element_type=jnp.float32) + params["b3"], 0.0)
    return h3


if __name__ == "__main__":
    input_size = 128
    latent_size = 32
    batch = 8

    key = jax.random.PRNGKey(0)
    k_x, k_p = jax.random.split(key)
    x = jax.random.normal(k_x, (batch, input_size), jnp.float32)
    params = init_params(k_p, input_size, latent_size)

    z = encoder_forward(x, params)
    z = jax.block_until_ready(z)

    z_ref = reference_forward(x, params)
    assert z.shape == (batch, latent_size), z.shape
    assert jnp.allclose(z, z_ref, atol=1e-2, rtol=1e-2), float(jnp.max(jnp.abs(z - z_ref)))

    print("KERNEL_OK")
</pallas_src>

<mosaic_0001>
module attributes {stable_mosaic.version = 11 : i64} {
  func.func @encoder_kernel(%arg0: i32, %arg1: memref<8x128xf32, #tpu.memory_space<vmem>>, %arg2: memref<128x128xbf16, #tpu.memory_space<vmem>>, %arg3: memref<1x128xf32, #tpu.memory_space<vmem>>, %arg4: memref<128x128xbf16, #tpu.memory_space<vmem>>, %arg5: memref<1x128xf32, #tpu.memory_space<vmem>>, %arg6: memref<128x32xbf16, #tpu.memory_space<vmem>>, %arg7: memref<1x32xf32, #tpu.memory_space<vmem>>, %arg8: memref<8x32xf32, #tpu.memory_space<vmem>>) attributes {dimension_semantics = [#tpu.dimension_semantics<parallel>], iteration_bounds = array<i64: 1>, scalar_prefetch = 0 : i64, scratch_operands = 0 : i64, tpu.core_type = #tpu.core_type<tc>, window_params = [{transform_indices = @transform_0, window_bounds = array<i64: 8, 128>}, {pipeline_mode = #tpu.pipeline_mode<synchronous>, transform_indices = @transform_1, window_bounds = array<i64: 128, 128>}, {pipeline_mode = #tpu.pipeline_mode<synchronous>, transform_indices = @transform_2, window_bounds = array<i64: 1, 128>}, {pipeline_mode = #tpu.pipeline_mode<synchronous>, transform_indices = @transform_3, window_bounds = array<i64: 128, 128>}, {pipeline_mode = #tpu.pipeline_mode<synchronous>, transform_indices = @transform_4, window_bounds = array<i64: 1, 128>}, {pipeline_mode = #tpu.pipeline_mode<synchronous>, transform_indices = @transform_5, window_bounds = array<i64: 128, 32>}, {pipeline_mode = #tpu.pipeline_mode<synchronous>, transform_indices = @transform_6, window_bounds = array<i64: 1, 32>}, {transform_indices = @transform_7, window_bounds = array<i64: 8, 32>}]} {
    %c0 = arith.constant 0 : index
    %c0_0 = arith.constant 0 : index
    %0 = vector.load %arg1[%c0, %c0_0] : memref<8x128xf32, #tpu.memory_space<vmem>>, vector<8x128xf32>
    %1 = arith.truncf %0 : vector<8x128xf32> to vector<8x128xbf16>
    %c0_1 = arith.constant 0 : index
    %c0_2 = arith.constant 0 : index
    %2 = vector.load %arg2[%c0_1, %c0_2] : memref<128x128xbf16, #tpu.memory_space<vmem>>, vector<128x128xbf16>
    %cst = arith.constant dense<0.000000e+00> : vector<8x128xf32>
    %3 = tpu.matmul %1, %2, %cst {dimension_numbers = #tpu.dot_dimension_numbers<[1], [0], [0], [1], [0, 0, 1, 1], [], []>} : vector<8x128xbf16>, vector<128x128xbf16>, vector<8x128xf32> -> vector<8x128xf32>
    %c0_3 = arith.constant 0 : index
    %c0_4 = arith.constant 0 : index
    %4 = vector.load %arg3[%c0_3, %c0_4] : memref<1x128xf32, #tpu.memory_space<vmem>>, vector<1x128xf32>
    %5 = vector.broadcast %4 : vector<1x128xf32> to vector<8x128xf32>
    %6 = arith.addf %3, %5 : vector<8x128xf32>
    %cst_5 = arith.constant 0.000000e+00 : f32
    %7 = vector.broadcast %cst_5 : f32 to vector<8x128xf32>
    %8 = arith.maximumf %6, %7 : vector<8x128xf32>
    %9 = arith.truncf %8 : vector<8x128xf32> to vector<8x128xbf16>
    %c0_6 = arith.constant 0 : index
    %c0_7 = arith.constant 0 : index
    %10 = vector.load %arg4[%c0_6, %c0_7] : memref<128x128xbf16, #tpu.memory_space<vmem>>, vector<128x128xbf16>
    %cst_8 = arith.constant dense<0.000000e+00> : vector<8x128xf32>
    %11 = tpu.matmul %9, %10, %cst_8 {dimension_numbers = #tpu.dot_dimension_numbers<[1], [0], [0], [1], [0, 0, 1, 1], [], []>} : vector<8x128xbf16>, vector<128x128xbf16>, vector<8x128xf32> -> vector<8x128xf32>
    %c0_9 = arith.constant 0 : index
    %c0_10 = arith.constant 0 : index
    %12 = vector.load %arg5[%c0_9, %c0_10] : memref<1x128xf32, #tpu.memory_space<vmem>>, vector<1x128xf32>
    %13 = vector.broadcast %12 : vector<1x128xf32> to vector<8x128xf32>
    %14 = arith.addf %11, %13 : vector<8x128xf32>
    %cst_11 = arith.constant 0.000000e+00 : f32
    %15 = vector.broadcast %cst_11 : f32 to vector<8x128xf32>
    %16 = arith.maximumf %14, %15 : vector<8x128xf32>
    %17 = arith.truncf %16 : vector<8x128xf32> to vector<8x128xbf16>
    %c0_12 = arith.constant 0 : index
    %c0_13 = arith.constant 0 : index
    %18 = vector.load %arg6[%c0_12, %c0_13] : memref<128x32xbf16, #tpu.memory_space<vmem>>, vector<128x32xbf16>
    %cst_14 = arith.constant dense<0.000000e+00> : vector<8x32xf32>
    %19 = tpu.matmul %17, %18, %cst_14 {dimension_numbers = #tpu.dot_dimension_numbers<[1], [0], [0], [1], [0, 0, 1, 1], [], []>} : vector<8x128xbf16>, vector<128x32xbf16>, vector<8x32xf32> -> vector<8x32xf32>
    %c0_15 = arith.constant 0 : index
    %c0_16 = arith.constant 0 : index
    %20 = vector.load %arg7[%c0_15, %c0_16] : memref<1x32xf32, #tpu.memory_space<vmem>>, vector<1x32xf32>
    %21 = vector.broadcast %20 : vector<1x32xf32> to vector<8x32xf32>
    %22 = arith.addf %19, %21 : vector<8x32xf32>
    %cst_17 = arith.constant 0.000000e+00 : f32
    %23 = vector.broadcast %cst_17 : f32 to vector<8x32xf32>
    %24 = arith.maximumf %22, %23 : vector<8x32xf32>
    %c0_18 = arith.constant 0 : index
    %c0_19 = arith.constant 0 : index
    %25 = vector.load %arg8[%c0_18, %c0_19] : memref<8x32xf32, #tpu.memory_space<vmem>>, vector<8x32xf32>
    tpu.vector_store %arg8[%c0_18, %c0_19], %24 {strides = array<i32>} : memref<8x32xf32, #tpu.memory_space<vmem>>, vector<8x32xf32>,
    return
  }
  func.func @transform_0(%arg0: i32) -> (i32, i32) {
    %c0_i32 = arith.constant 0 : i32
    %c0_i32_0 = arith.constant 0 : i32
    return %arg0, %c0_i32 : i32, i32
  }
  func.func @transform_1(%arg0: i32) -> (i32, i32) {
    %c0_i32 = arith.constant 0 : i32
    %c0_i32_0 = arith.constant 0 : i32
    %c0_i32_1 = arith.constant 0 : i32
    return %c0_i32, %c0_i32_0 : i32, i32
  }
  func.func @transform_2(%arg0: i32) -> (i32, i32) {
    %c0_i32 = arith.constant 0 : i32
    %c0_i32_0 = arith.constant 0 : i32
    %c0_i32_1 = arith.constant 0 : i32
    return %c0_i32, %c0_i32_0 : i32, i32
  }
  func.func @transform_3(%arg0: i32) -> (i32, i32) {
    %c0_i32 = arith.constant 0 : i32
    %c0_i32_0 = arith.constant 0 : i32
    %c0_i32_1 = arith.constant 0 : i32
    return %c0_i32, %c0_i32_0 : i32, i32
  }
  func.func @transform_4(%arg0: i32) -> (i32, i32) {
    %c0_i32 = arith.constant 0 : i32
    %c0_i32_0 = arith.constant 0 : i32
    %c0_i32_1 = arith.constant 0 : i32
    return %c0_i32, %c0_i32_0 : i32, i32
  }
  func.func @transform_5(%arg0: i32) -> (i32, i32) {
    %c0_i32 = arith.constant 0 : i32
    %c0_i32_0 = arith.constant 0 : i32
    %c0_i32_1 = arith.constant 0 : i32
    return %c0_i32, %c0_i32_0 : i32, i32
  }
  func.func @transform_6(%arg0: i32) -> (i32, i32) {
    %c0_i32 = arith.constant 0 : i32
    %c0_i32_0 = arith.constant 0 : i32
    %c0_i32_1 = arith.constant 0 : i32
    return %c0_i32, %c0_i32_0 : i32, i32
  }
  func.func @transform_7(%arg0: i32) -> (i32, i32) {
    %c0_i32 = arith.constant 0 : i32
    %c0_i32_0 = arith.constant 0 : i32
    return %arg0, %c0_i32 : i32, i32
  }
}

</mosaic_0001>

<llo_original>
// kernel: tpu_custom_call.1
$region0: #{tpu_custom_call.1}
  #allocation0 [shape = 'u32[]', space=smem, size = 0x4, offset = 0x4, fixed_abs, tag = 'smem constant byte address 0x4 - core index']
  #allocation1 [shape = 'u32[72,128]{1,0:T(1,128)}', space=vmem, size = 0x9000, scoped, tag = 'internal scratch']
  %s0 = inlined_call_operand.vmem [shape: f32[8,128], index: 0, kind: input, shape index: {}]
  %s1 = inlined_call_operand.vmem [shape: bf16[128,128], index: 1, kind: input, shape index: {}]
  %s2 = inlined_call_operand.vmem [shape: f32[1,128], index: 2, kind: input, shape index: {}]
  %s3 = inlined_call_operand.hbm [shape: bf16[128,128], index: 3, kind: input, shape index: {}]
  %s4 = inlined_call_operand.vmem [shape: f32[1,128], index: 4, kind: input, shape index: {}]
  %s5 = inlined_call_operand.vmem [shape: bf16[128,32], index: 5, kind: input, shape index: {}]
  %s6 = inlined_call_operand.vmem [shape: f32[1,32], index: 6, kind: input, shape index: {}]
  %s7 = inlined_call_operand.hbm [shape: f32[8,32], index: 7, kind: output, shape index: {}]
  %s8 = sld [smem:[#allocation0]]
  $region42: #{tpu_custom_call.1} parent=0
    _
  %s10 = ssub.s32 1, %s8
  %s11 = scalar_select 0, %s10, %s8
  $region1: #{tpu_custom_call.1} parent=0
    #allocation2 [shape = 'u8[32768]{0}', space=vmem, size = 0x8000, scoped, tag = 'input window, operand 3, single buffered']
    #allocation3 [shape = 's32[1]{0}', space=sflag, size = 0x4, scoped, tag = 'scoped memory for tpu_custom_call.1']
    #allocation4 [shape = 's32[1]{0}', space=sflag, size = 0x4, scoped, tag = 'scoped memory for tpu_custom_call.1']
    #allocation5 [shape = 'u8[4096]{0}', space=vmem, size = 0x1000, scoped, tag = 'output window, operand 0, single buffered']
    %12 = vsyncpa [#allocation3], 0
    %13 = vsyncpa [#allocation4], 0
    // Predicated region
    $region2: #{tpu_custom_call.1} parent=1 // pred_check
      _
    $region3: #{tpu_custom_call.1} parent=1 // pred_check_branch
      %15 = sbr.rel (0) target = $region5
    $region4: #{tpu_custom_call.1} parent=1 // pred_region
      _
    $region5: #{tpu_custom_call.1} parent=1 // pred_fallthru
      _
    // Predicated region
    $region6: #{tpu_custom_call.1} parent=1 // pred_check
      _
    $region7: #{tpu_custom_call.1} parent=1 // pred_check_branch
      %17 = sbr.rel (0) target = $region9
    $region8: #{tpu_custom_call.1} parent=1 // pred_region
      _
    $region9: #{tpu_custom_call.1} parent=1 // pred_fallthru
      _
    // Predicated region
    $region10: #{tpu_custom_call.1} parent=1 // pred_check
      _
    $region11: #{tpu_custom_call.1} parent=1 // pred_check_branch
      %19 = sbr.rel (0) target = $region13
    $region12: #{tpu_custom_call.1} parent=1 // pred_region
      _
    $region13: #{tpu_custom_call.1} parent=1 // pred_fallthru
      _
    // Predicated region
    $region14: #{tpu_custom_call.1} parent=1 // pred_check
      _
    $region15: #{tpu_custom_call.1} parent=1 // pred_check_branch
      %21 = sbr.rel (0) target = $region17
    $region16: #{tpu_custom_call.1} parent=1 // pred_region
      %23 = vsyncadd [#allocation3], 0
      %s24 = sshll.u32 %s3, 4
      %s25 = int_to_ptr.hbm [resolvable:$true] %s24
      %s26 = sshll.u32 [#allocation2], 4
      %s27 = int_to_ptr.vmem [resolvable:$true] %s26
      %32 = dma.hbm_to_vmem [thread:$0]  %s25, 1024, %s27, [#allocation3], 64, 64, 4
    $region17: #{tpu_custom_call.1} parent=1 // pred_fallthru
      _
    // Predicated region
    $region18: #{tpu_custom_call.1} parent=1 // pred_check
      _
    $region19: #{tpu_custom_call.1} parent=1 // pred_check_branch
      %34 = sbr.rel (0) target = $region21
    $region20: #{tpu_custom_call.1} parent=1 // pred_region
      _
    $region21: #{tpu_custom_call.1} parent=1 // pred_fallthru
      _
    // Predicated region
    $region22: #{tpu_custom_call.1} parent=1 // pred_check
      _
    $region23: #{tpu_custom_call.1} parent=1 // pred_check_branch
      %36 = sbr.rel (0) target = $region25
    $region24: #{tpu_custom_call.1} parent=1 // pred_region
      _
    $region25: #{tpu_custom_call.1} parent=1 // pred_fallthru
      _
    // Predicated region
    $region26: #{tpu_custom_call.1} parent=1 // pred_check
      _
    $region27: #{tpu_custom_call.1} parent=1 // pred_check_branch
      %38 = sbr.rel (0) target = $region29
    $region28: #{tpu_custom_call.1} parent=1 // pred_region
      _
    $region29: #{tpu_custom_call.1} parent=1 // pred_fallthru
      _
    // Predicated region
    $region30: #{tpu_custom_call.1} parent=1 // pred_check
      _
    $region31: #{tpu_custom_call.1} parent=1 // pred_check_branch
      %40 = sbr.rel (0) target = $region33
    $region32: #{tpu_custom_call.1} parent=1 // pred_region
      %42 = dma.done [#allocation3], 1024
    $region33: #{tpu_custom_call.1} parent=1 // pred_fallthru
      _
    %v43 = vld [vmem:[%s0] sm:$0xff]
    %v44 = vpack.c.bf16 %v43, %v43
    %v45 = vld [vmem:[%s1] sm:$0xf]
    %v46 = vld [vmem:[%s1 + $0x4] sm:$0xf]
    %v47 = vld [vmem:[%s1 + $0x8] sm:$0xf]
    %v48 = vld [vmem:[%s1 + $0xc] sm:$0xf]
    %v49 = vld [vmem:[%s1 + $0x10] sm:$0xf]
    %v50 = vld [vmem:[%s1 + $0x14] sm:$0xf]
    %v51 = vld [vmem:[%s1 + $0x18] sm:$0xf]
    %v52 = vld [vmem:[%s1 + $0x1c] sm:$0xf]
    %v53 = vld [vmem:[%s1 + $0x20] sm:$0xf]
    %v54 = vld [vmem:[%s1 + $0x24] sm:$0xf]
    %v55 = vld [vmem:[%s1 + $0x28] sm:$0xf]
    %v56 = vld [vmem:[%s1 + $0x2c] sm:$0xf]
    %v57 = vld [vmem:[%s1 + $0x30] sm:$0xf]
    %v58 = vld [vmem:[%s1 + $0x34] sm:$0xf]
    %v59 = vld [vmem:[%s1 + $0x38] sm:$0xf]
    %v60 = vld [vmem:[%s1 + $0x3c] sm:$0xf]
    %v61 = vld [vmem:[%s2] sm:$0x1]
    %v63 = vperm.slane %v61, 0
    %v81 = vunpack.c.l.b16 %v45
    %v82 = vunpack.c.l.b16 %v46
    %v83 = vunpack.c.l.b16 %v47
    %v84 = vunpack.c.l.b16 %v48
    %v85 = vunpack.c.l.b16 %v49
    %v86 = vunpack.c.l.b16 %v50
    %v87 = vunpack.c.l.b16 %v51
    %v88 = vunpack.c.l.b16 %v52
    %v89 = vunpack.c.l.b16 %v53
    %v90 = vunpack.c.l.b16 %v54
    %v91 = vunpack.c.l.b16 %v55
    %v92 = vunpack.c.l.b16 %v56
    %v93 = vunpack.c.l.b16 %v57
    %v94 = vunpack.c.l.b16 %v58
    %v95 = vunpack.c.l.b16 %v59
    %v96 = vunpack.c.l.b16 %v60
    %v97 = vpack.c.b16 %v82, %v81
    %v98 = vpack.c.b16 %v84, %v83
    %v99 = vpack.c.b16 %v86, %v85
    %v100 = vpack.c.b16 %v88, %v87
    %v101 = vpack.c.b16 %v90, %v89
    %v102 = vpack.c.b16 %v92, %v91
    %v103 = vpack.c.b16 %v94, %v93
    %v104 = vpack.c.b16 %v96, %v95
    %113 = vmatpush.bf16.msra.mxu0 %v104
    %114 = vmatpush.bf16.msra.mxu0 %v103
    %115 = vmatpush.bf16.msra.mxu0 %v102
    %116 = vmatpush.bf16.msra.mxu0 %v101
    %117 = vmatpush.bf16.msra.mxu0 %v100
    %118 = vmatpush.bf16.msra.mxu0 %v99
    %119 = vmatpush.bf16.msra.mxu0 %v98
    %120 = vmatpush.bf16.msra.mxu0 %v97
    %121 = vmatmul.bf16.gmra.mxu0 %v44
    %v122 = vpop.f32.mrf.mxu0
    %v123 = vadd.f32 %v63, %v122
    %v124 = vpop.f32.mrf.mxu0
    %125 = vdwg.mxu0
    %v126 = vmax.f32 %v123, 0.0
    %v127 = vpack.c.bf16 %v126, %v126
    %v128 = vld [vmem:[#allocation2] sm:$0xf]
    %v129 = vld [vmem:[#allocation2 + $0x4] sm:$0xf]
    %v130 = vld [vmem:[#allocation2 + $0x8] sm:$0xf]
    %v131 = vld [vmem:[#allocation2 + $0xc] sm:$0xf]
    %v132 = vld [vmem:[#allocation2 + $0x10] sm:$0xf]
    %v133 = vld [vmem:[#allocation2 + $0x14] sm:$0xf]
    %v134 = vld [vmem:[#allocation2 + $0x18] sm:$0xf]
    %v135 = vld [vmem:[#allocation2 + $0x1c] sm:$0xf]
    %v136 = vld [vmem:[#allocation2 + $0x20] sm:$0xf]
    %v137 = vld [vmem:[#allocation2 + $0x24] sm:$0xf]
    %v138 = vld [vmem:[#allocation2 + $0x28] sm:$0xf]
    %v139 = vld [vmem:[#allocation2 + $0x2c] sm:$0xf]
    %v140 = vld [vmem:[#allocation2 + $0x30] sm:$0xf]
    %v141 = vld [vmem:[#allocation2 + $0x34] sm:$0xf]
    %v142 = vld [vmem:[#allocation2 + $0x38] sm:$0xf]
    %v143 = vld [vmem:[#allocation2 + $0x3c] sm:$0xf]
    %v144 = vld [vmem:[%s4] sm:$0x1]
    %v146 = vperm.slane %v144, 0
    %v164 = vunpack.c.l.b16 %v128
    %v165 = vunpack.c.l.b16 %v129
    %v166 = vunpack.c.l.b16 %v130
    %v167 = vunpack.c.l.b16 %v131
    %v168 = vunpack.c.l.b16 %v132
    %v169 = vunpack.c.l.b16 %v133
    %v170 = vunpack.c.l.b16 %v134
    %v171 = vunpack.c.l.b16 %v135
    %v172 = vunpack.c.l.b16 %v136
    %v173 = vunpack.c.l.b16 %v137
    %v174 = vunpack.c.l.b16 %v138
    %v175 = vunpack.c.l.b16 %v139
    %v176 = vunpack.c.l.b16 %v140
    %v177 = vunpack.c.l.b16 %v141
    %v178 = vunpack.c.l.b16 %v142
    %v179 = vunpack.c.l.b16 %v143
    %v180 = vpack.c.b16 %v165, %v164
    %v181 = vpack.c.b16 %v167, %v166
    %v182 = vpack.c.b16 %v169, %v168
    %v183 = vpack.c.b16 %v171, %v170
    %v184 = vpack.c.b16 %v173, %v172
    %v185 = vpack.c.b16 %v175, %v174
    %v186 = vpack.c.b16 %v177, %v176
    %v187 = vpack.c.b16 %v179, %v178
    %196 = vmatpush.bf16.msra.mxu0 %v187
    %197 = vmatpush.bf16.msra.mxu0 %v186
    %198 = vmatpush.bf16.msra.mxu0 %v185
    %199 = vmatpush.bf16.msra.mxu0 %v184
    %200 = vmatpush.bf16.msra.mxu0 %v183
    %201 = vmatpush.bf16.msra.mxu0 %v182
    %202 = vmatpush.bf16.msra.mxu0 %v181
    %203 = vmatpush.bf16.msra.mxu0 %v180
    %204 = vmatmul.bf16.gmra.mxu0 %v127
    %v205 = vpop.f32.mrf.mxu0
    %v206 = vadd.f32 %v146, %v205
    %v207 = vpop.f32.mrf.mxu0
    %208 = vdwg.mxu0
    %v209 = vmax.f32 %v206, 0.0
    %v210 = vpack.c.bf16 %v209, %v209
    %v211 = vld [vmem:[%s5] sm:$0xf]
    %v212 = vld [vmem:[%s5 + $0x4] sm:$0xf]
    %v213 = vld [vmem:[%s5 + $0x8] sm:$0xf]
    %v214 = vld [vmem:[%s5 + $0xc] sm:$0xf]
    %v215 = vld [vmem:[%s5 + $0x10] sm:$0xf]
    %v216 = vld [vmem:[%s5 + $0x14] sm:$0xf]
    %v217 = vld [vmem:[%s5 + $0x18] sm:$0xf]
    %v218 = vld [vmem:[%s5 + $0x1c] sm:$0xf]
    %v219 = vld [vmem:[%s5 + $0x20] sm:$0xf]
    %v220 = vld [vmem:[%s5 + $0x24] sm:$0xf]
    %v221 = vld [vmem:[%s5 + $0x28] sm:$0xf]
    %v222 = vld [vmem:[%s5 + $0x2c] sm:$0xf]
    %v223 = vld [vmem:[%s5 + $0x30] sm:$0xf]
    %v224 = vld [vmem:[%s5 + $0x34] sm:$0xf]
    %v225 = vld [vmem:[%s5 + $0x38] sm:$0xf]
    %v226 = vld [vmem:[%s5 + $0x3c] sm:$0xf]
    %v227 = vld [vmem:[%s6] sm:$0x1]
    %v229 = vperm.slane %v227, 0
    %v247 = vunpack.c.l.b16 %v211
    %v248 = vunpack.c.l.b16 %v212
    %v249 = vunpack.c.l.b16 %v213
    %v250 = vunpack.c.l.b16 %v214
    %v251 = vunpack.c.l.b16 %v215
    %v252 = vunpack.c.l.b16 %v216
    %v253 = vunpack.c.l.b16 %v217
    %v254 = vunpack.c.l.b16 %v218
    %v255 = vunpack.c.l.b16 %v219
    %v256 = vunpack.c.l.b16 %v220
    %v257 = vunpack.c.l.b16 %v221
    %v258 = vunpack.c.l.b16 %v222
    %v259 = vunpack.c.l.b16 %v223
    %v260 = vunpack.c.l.b16 %v224
    %v261 = vunpack.c.l.b16 %v225
    %v262 = vunpack.c.l.b16 %v226
    %v263 = vpack.c.b16 %v248, %v247
    %v264 = vpack.c.b16 %v250, %v249
    %v265 = vpack.c.b16 %v252, %v251
    %v266 = vpack.c.b16 %v254, %v253
    %v267 = vpack.c.b16 %v256, %v255
    %v268 = vpack.c.b16 %v258, %v257
    %v269 = vpack.c.b16 %v260, %v259
    %v270 = vpack.c.b16 %v262, %v261
    %279 = vmatpush.bf16.msra.mxu0 %v270
    %280 = vmatpush.bf16.msra.mxu0 %v269
    %281 = vmatpush.bf16.msra.mxu0 %v268
    %282 = vmatpush.bf16.msra.mxu0 %v267
    %283 = vmatpush.bf16.msra.mxu0 %v266
    %284 = vmatpush.bf16.msra.mxu0 %v265
    %285 = vmatpush.bf16.msra.mxu0 %v264
    %286 = vmatpush.bf16.msra.mxu0 %v263
    %287 = vmatmul.bf16.gmra.mxu0 %v210
    %v288 = vpop.f32.mrf.mxu0
    %v289 = vadd.f32 %v229, %v288
    %v290 = vpop.f32.mrf.mxu0
    %291 = vdwg.mxu0
    %v292 = vmax.f32 %v289, 0.0
    %vm293 = vcmask 261120
    %294 = vst.msk [vmem:[#allocation5] sm:$0xff] %vm293, %v292
    // Predicated region
    $region34: #{tpu_custom_call.1} parent=1 // pred_check
      _
    $region35: #{tpu_custom_call.1} parent=1 // pred_check_branch
      %296 = sbr.rel (0) target = $region37
    $region36: #{tpu_custom_call.1} parent=1 // pred_region
      %298 = vsyncadd [#allocation4], 0
      %s300 = sshll.u32 [#allocation5], 4
      %s301 = int_to_ptr.vmem [resolvable:$true] %s300
      %s302 = sshll.u32 %s7, 4
      %s303 = int_to_ptr.hbm [resolvable:$true] %s302
      %305 = dma.vmem_to_hbm [thread:$0]  %s301, 128, %s303, [#allocation4]
    $region37: #{tpu_custom_call.1} parent=1 // pred_fallthru
      _
    // Predicated region
    $region38: #{tpu_custom_call.1} parent=1 // pred_check
      _
    $region39: #{tpu_custom_call.1} parent=1 // pred_check_branch
      %307 = sbr.rel (0) target = $region41
    $region40: #{tpu_custom_call.1} parent=1 // pred_region
      %309 = dma.done [#allocation4], 128
    $region41: #{tpu_custom_call.1} parent=1 // pred_fallthru
      _
    %310 = vsyncpa [#allocation3], 1
    %311 = vsyncpa [#allocation4], 1

</llo_original>
